<compile_context>
chip_gen: v7x
topology: tpu7x:2x2x1
jax: 0.10.0
libtpu: 0.0.40
codegen_flags: <defaults>
</compile_context>

<pallas_src>
import jax
import jax.numpy as jnp
from jax.experimental import pallas as pl
from jax.experimental.pallas import tpu as pltpu

_LANE = 128                       # vreg lane width
_DEFAULT_TILE = 512               # ~85% of HBM roofline for mem-bound tiled kernels
_FALLBACK_ELEMS = 64 * 1024       # below this, Pallas launch overhead dominates


def _transpose_kernel(x_ref, o_ref):
    # Leading batch dim is squeezed out by the BlockSpec, so this is a pure
    # 2-D tile transpose: x_ref is (TL, TC), o_ref is (TC, TL).
    o_ref[...] = x_ref[...].T


def _pick_tile(dim: int, target: int) -> int:
    """Lane-friendly tile size for one axis."""
    if dim <= target:
        return dim                               # full-extent block: always legal
    t = (target // _LANE) * _LANE
    while t >= _LANE:
        if dim % t == 0:                         # prefer an exact, 128-aligned divisor
            return t
        t -= _LANE
    return (target // _LANE) * _LANE             # ragged edge: Pallas masks boundary blocks


def transpose_pallas(x, shape=(1, 2), tile=_DEFAULT_TILE):
    """Equivalent of torch.Tensor.transpose(*shape).

    The (B, L, C) -> (B, C, L) case (dims 1 and 2 of a 3-D tensor) runs as a
    tiled Pallas kernel; other dim pairs / tiny shapes use jnp.swapaxes.
    """
    d0, d1 = shape
    d0 = d0 % x.ndim
    d1 = d1 % x.ndim
    d0, d1 = sorted((d0, d1))

    # General / small-shape fallback (same semantics as torch .transpose).
    if not (x.ndim == 3 and (d0, d1) == (1, 2)):
        return jnp.swapaxes(x, d0, d1)

    B, L, C = x.shape
    if L * C < _FALLBACK_ELEMS:
        # Sub-vreg work per batch element: XLA's fused copy beats a kernel launch.
        return jnp.swapaxes(x, 1, 2)

    TL = _pick_tile(L, tile)
    TC = _pick_tile(C, tile)
    itemsize = jnp.dtype(x.dtype).itemsize

    # Double-buffered input tile + double-buffered output tile, with headroom.
    tile_bytes = TL * TC * itemsize
    needed = 4 * tile_bytes
    vmem_limit_bytes = int(min(max(4 * needed, 16 * 1024 * 1024), 32 * 1024 * 1024))

    grid = (B, pl.cdiv(L, TL), pl.cdiv(C, TC))

    return pl.pallas_call(
        _transpose_kernel,
        out_shape=jax.ShapeDtypeStruct((B, C, L), x.dtype),
        grid_spec=pltpu.PrefetchScalarGridSpec(
            num_scalar_prefetch=0,
            grid=grid,
            in_specs=[
                pl.BlockSpec((pl.Squeezed(), TL, TC), lambda b, i, j: (b, i, j)),
            ],
            # Output tile is the transposed tile placed at the transposed block
            # coordinates; last dim TL is lane-dense (>=128-multiple or full L).
            out_specs=pl.BlockSpec((pl.Squeezed(), TC, TL), lambda b, i, j: (b, j, i)),
        ),
        compiler_params=pltpu.CompilerParams(
            dimension_semantics=("parallel", "parallel", "parallel"),
            vmem_limit_bytes=vmem_limit_bytes,
        ),
        cost_estimate=pl.CostEstimate(
            flops=0,
            transcendentals=0,
            bytes_accessed=2 * B * L * C * itemsize,
        ),
    )(x)


if __name__ == "__main__":
    key = jax.random.PRNGKey(0)

    # 1) Tiny shape consistent with the module's usage in diffts (fallback path).
    B, L, C = 2, 8, 32
    x_small = jax.random.normal(key, (B, L, C), dtype=jnp.float32)
    y_small = transpose_pallas(x_small, shape=(1, 2))
    jax.block_until_ready(y_small)
    assert y_small.shape == (B, C, L), y_small.shape
    assert jnp.array_equal(y_small, jnp.swapaxes(x_small, 1, 2)), "mismatch (fallback path)"

    # 2) Slightly larger shape to exercise the tiled Pallas path (forced small
    #    tile so the 3-D grid + transposed output index_map are exercised).
    B2, L2, C2 = 2, 256, 384
    x_big = jax.random.normal(jax.random.PRNGKey(0), (B2, L2, C2), dtype=jnp.float32)
    y_big = transpose_pallas(x_big, shape=(1, 2), tile=128)
    jax.block_until_ready(y_big)
    assert y_big.shape == (B2, C2, L2), y_big.shape
    assert jnp.array_equal(y_big, jnp.swapaxes(x_big, 1, 2)), "mismatch (Pallas path)"

    print("KERNEL_OK")
</pallas_src>

<mosaic_0001>
module attributes {stable_mosaic.version = 11 : i64} {
  func.func @_transpose_kernel(%arg0: i32, %arg1: i32, %arg2: i32, %arg3: memref<1x128x128xf32, #tpu.memory_space<vmem>>, %arg4: memref<1x128x128xf32, #tpu.memory_space<vmem>>) attributes {dimension_semantics = [#tpu.dimension_semantics<parallel>, #tpu.dimension_semantics<parallel>, #tpu.dimension_semantics<parallel>], iteration_bounds = array<i64: 2, 2, 3>, scalar_prefetch = 0 : i64, scratch_operands = 0 : i64, tpu.core_type = #tpu.core_type<tc>, window_params = [{transform_indices = @transform_0, window_bounds = array<i64: 1, 128, 128>}, {transform_indices = @transform_1, window_bounds = array<i64: 1, 128, 128>}]} {
    %c0 = arith.constant 0 : index
    %c0_0 = arith.constant 0 : index
    %c0_1 = arith.constant 0 : index
    %0 = vector.load %arg3[%c0, %c0_0, %c0_1] : memref<1x128x128xf32, #tpu.memory_space<vmem>>, vector<1x128x128xf32>
    %1 = vector.shape_cast %0 : vector<1x128x128xf32> to vector<128x128xf32>
    %2 = tpu.transpose %1, [1, 0] : vector<128x128xf32> -> vector<128x128xf32>
    %c0_2 = arith.constant 0 : index
    %c0_3 = arith.constant 0 : index
    %c0_4 = arith.constant 0 : index
    %3 = vector.load %arg4[%c0_2, %c0_3, %c0_4] : memref<1x128x128xf32, #tpu.memory_space<vmem>>, vector<1x128x128xf32>
    %4 = vector.shape_cast %3 : vector<1x128x128xf32> to vector<128x128xf32>
    %5 = vector.shape_cast %2 : vector<128x128xf32> to vector<1x128x128xf32>
    tpu.vector_store %arg4[%c0_2, %c0_3, %c0_4], %5 {strides = array<i32>} : memref<1x128x128xf32, #tpu.memory_space<vmem>>, vector<1x128x128xf32>,
    return
  }
  func.func @transform_0(%arg0: i32, %arg1: i32, %arg2: i32) -> (i32, i32, i32) {
    %c0_i32 = arith.constant 0 : i32
    return %arg0, %arg1, %arg2 : i32, i32, i32
  }
  func.func @transform_1(%arg0: i32, %arg1: i32, %arg2: i32) -> (i32, i32, i32) {
    %c0_i32 = arith.constant 0 : i32
    return %arg0, %arg2, %arg1 : i32, i32, i32
  }
}

</mosaic_0001>

<llo_original>
// kernel: tpu_custom_call.1
$region0: #{tpu_custom_call.1}
  #allocation0 [shape = 'u32[]', space=smem, size = 0x4, offset = 0x4, fixed_abs, tag = 'smem constant byte address 0x4 - core index']
  #allocation1 [shape = 'u32[144,128]{1,0:T(1,128)}', space=vmem, size = 0x12000, scoped, tag = 'internal scratch']
  %s0 = inlined_call_operand.hbm [shape: f32[2,256,384], index: 0, kind: input, shape index: {}]
  %s1 = inlined_call_operand.hbm [shape: f32[2,384,256], index: 1, kind: output, shape index: {}]
  %s2 = sld [smem:[#allocation0]]
  $region41: #{tpu_custom_call.1} parent=0
    _
  %s4 = ssub.s32 1, %s2
  %s5 = scalar_select 0, %s4, %s2
  $region1: #{tpu_custom_call.1} parent=0
    #allocation2 [shape = 'u8[131072]{0}', space=vmem, size = 0x20000, scoped, tag = 'input window, operand 0']
    #allocation3 [shape = 's32[2]{0}', space=sflag, size = 0x8, scoped, tag = 'scoped memory for tpu_custom_call.1']
    #allocation4 [shape = 's32[2]{0}', space=sflag, size = 0x8, scoped, tag = 'scoped memory for tpu_custom_call.1']
    #allocation5 [shape = 'u8[131072]{0}', space=vmem, size = 0x20000, scoped, tag = 'output window, operand 0']
    %6 = vsyncpa [#allocation3], 0
    %s7 = scalar_lea.sflag [#allocation3], 1
    %8 = vsyncpa %s7, 0
    %9 = vsyncpa [#allocation4], 0
    %s10 = scalar_lea.sflag [#allocation4], 1
    %11 = vsyncpa %s10, 0
    loop: start=0, step=1, limit=14
    $region2: #{tpu_custom_call.1} parent=1 // loop_pre_header
      _
    $region3: #{tpu_custom_call.1} parent=1 // loop_header
      %s13 = sphi 0, %s17
      %p14 = scmp.ge.s32.totalorder %s13, 14
      %s20 = sphi 0, %s39
      %s21 = sphi 0, %s35
      %s22 = sphi 0, %s31
      %s23 = sphi 0, %s20
      %s24 = sphi 0, %s21
      %s25 = sphi 0, %s22
      %s26 = sphi 0, %s23
      %s27 = sphi 0, %s24
      %s28 = sphi 0, %s25
      %s46 = sphi 0, %s48
      %s49 = sphi 0, %s46
      %s50 = sphi 0, %s49
      %s66 = sphi 0, %s50
      %s76 = sphi 0, %s78
      %s79 = sphi 0, %s76
      %s80 = sphi 0, %s79
      %s96 = sphi 0, %s80
    $region4: #{tpu_custom_call.1} parent=1 // loop_header_branch
      %16 = sbr.rel (%p14) target = $region8
    $region5: #{tpu_custom_call.1} parent=1 // loop_body
      %s18 = ssub.s32 %s13, 1
      %s19 = ssub.s32 %s13, 2
      %s29 = sadd.s32 1, %s22
      %p30 = scmp.ge.s32.totalorder %s29, 3
      %s31 = scalar_select %p30, 0, %s29
      %s32 = sadd.s32 1, %s21
      %s33 = scalar_select %p30, %s32, %s21
      %p34 = scmp.ge.s32.totalorder %s33, 2
      %s35 = scalar_select %p34, 0, %s33
      %s36 = sadd.s32 1, %s20
      %s37 = scalar_select %p34, %s36, %s20
      %p38 = scmp.ge.s32.totalorder %s37, 2
      %s39 = scalar_select %p38, 0, %s37
      %s40 = ssub.s32 %s20, %s39
      %s41 = ssub.s32 %s21, %s35
      %s42 = sor.u32 %s40, %s41
      %s43 = ssub.s32 %s22, %s31
      %s44 = sor.u32 %s42, %s43
      %p45 = scmp.eq.s32.totalorder %s44, 0
      %s47 = sadd.s32 %s46, 1
      %s48 = scalar_select %p45, %s46, %s47
      %p51 = pneg %p45
      %p52 = scmp.eq.s32.totalorder %s13, 11
      %p53 = por %p51, %p52
      %p54 = scmp.ne.s32.totalorder %s46, %s49
      %p55 = scmp.eq.s32.totalorder %s13, 0
      %p56 = por %p54, %p55
      %p57 = scmp.ne.s32.totalorder %s46, %s49
      %p58 = scmp.eq.s32.totalorder %s18, 11
      %p59 = por %p57, %p58
      %p60 = scmp.ne.s32.totalorder %s49, %s50
      %p61 = scmp.eq.s32.totalorder %s18, 0
      %p62 = por %p60, %p61
      %p63 = scmp.ne.s32.totalorder %s49, %s50
      %p64 = scmp.eq.s32.totalorder %s19, 11
      %p65 = por %p63, %p64
      %p67 = scmp.ne.s32.totalorder %s50, %s66
      %p68 = scmp.eq.s32.totalorder %s19, 0
      %p69 = por %p67, %p68
      %s70 = ssub.s32 %s20, %s39
      %s71 = ssub.s32 %s22, %s31
      %s72 = sor.u32 %s70, %s71
      %s73 = ssub.s32 %s21, %s35
      %s74 = sor.u32 %s72, %s73
      %p75 = scmp.eq.s32.totalorder %s74, 0
      %s77 = sadd.s32 %s76, 1
      %s78 = scalar_select %p75, %s76, %s77
      %p81 = pneg %p75
      %p82 = scmp.eq.s32.totalorder %s13, 11
      %p83 = por %p81, %p82
      %p84 = scmp.ne.s32.totalorder %s76, %s79
      %p85 = scmp.eq.s32.totalorder %s13, 0
      %p86 = por %p84, %p85
      %p87 = scmp.ne.s32.totalorder %s76, %s79
      %p88 = scmp.eq.s32.totalorder %s18, 11
      %p89 = por %p87, %p88
      %p90 = scmp.ne.s32.totalorder %s79, %s80
      %p91 = scmp.eq.s32.totalorder %s18, 0
      %p92 = por %p90, %p91
      %p93 = scmp.ne.s32.totalorder %s79, %s80
      %p94 = scmp.eq.s32.totalorder %s19, 11
      %p95 = por %p93, %p94
      %p97 = scmp.ne.s32.totalorder %s80, %s96
      %p98 = scmp.eq.s32.totalorder %s19, 0
      %p99 = por %p97, %p98
      %p100 = scmp.le.s32.totalorder 1, %s13
      %p101 = scmp.lt.s32.totalorder %s13, 13
      %p102 = pnand %p100, %p101
      %p103 = pneg %p102
      // Predicated region
      $region9: #{tpu_custom_call.1} parent=5 // pred_check
        _
      $region10: #{tpu_custom_call.1} parent=5 // pred_check_branch
        %105 = sbr.rel (%p102) target = $region12
      $region11: #{tpu_custom_call.1} parent=5 // pred_region
        %s106 = ssub.s32 %s13, 1
      $region12: #{tpu_custom_call.1} parent=5 // pred_fallthru
        _
      %p107 = scmp.lt.s32.totalorder %s13, 12
      // Predicated region
      $region13: #{tpu_custom_call.1} parent=5 // pred_check
        %p108 = pneg %p107
      $region14: #{tpu_custom_call.1} parent=5 // pred_check_branch
        %110 = sbr.rel (%p108) target = $region16
      $region15: #{tpu_custom_call.1} parent=5 // pred_region
        // Predicated region
        $region17: #{tpu_custom_call.1} parent=15 // pred_check
          %p111 = pneg %p56
        $region18: #{tpu_custom_call.1} parent=15 // pred_check_branch
          %113 = sbr.rel (%p111) target = $region20
        $region19: #{tpu_custom_call.1} parent=15 // pred_region
          %s114 = sand.u32 %s46, 1
          %s115 = scalar_lea.sflag [#allocation3], %s114
          %s116 = sand.u32 %s46, 1
          %s117 = smul.addr %s116, 128
          %s118 = scalar_lea.vmem [#allocation2], %s117
          %s119 = smul.u32 16, %s21
          %s121 = ssub.s32 2048, 2048
          %122 = vsyncadd %s115, %s121
          %s123 = smul.addr %s119, 3
          %s124 = sadd.s32 %s22, %s123
          %s125 = smul.addr %s20, 96
          %s126 = sadd.s32 %s124, %s125
          %s127 = smul.addr %s126, 128
          %s128 = scalar_lea.hbm %s0, %s127
          %s129 = sshll.u32 %s118, 4
          %s130 = int_to_ptr.vmem [resolvable:$true] %s129
          %135 = dma.hbm_to_vmem [thread:$0]  %s128, 2048, %s130, %s115, 384, 128, 8
        $region20: #{tpu_custom_call.1} parent=15 // pred_fallthru
          _
      $region16: #{tpu_custom_call.1} parent=5 // pred_fallthru
        _
      %p136 = scmp.le.s32.totalorder 1, %s13
      %p137 = scmp.lt.s32.totalorder %s13, 13
      %p138 = pnand %p136, %p137
      %p139 = pneg %p138
      // Predicated region
      $region21: #{tpu_custom_call.1} parent=5 // pred_check
        _
      $region22: #{tpu_custom_call.1} parent=5 // pred_check_branch
        %141 = sbr.rel (%p138) target = $region24
      $region23: #{tpu_custom_call.1} parent=5 // pred_region
        %s142 = ssub.s32 %s13, 1
        %s143 = sand.u32 %s49, 1
        %s144 = scalar_lea.sflag [#allocation3], %s143
        %s145 = sand.u32 %s49, 1
        %s146 = smul.addr %s145, 128
        %s147 = scalar_lea.vmem [#allocation2], %s146
        // Predicated region
        $region25: #{tpu_custom_call.1} parent=23 // pred_check
          %p148 = pneg %p62
        $region26: #{tpu_custom_call.1} parent=23 // pred_check_branch
          %150 = sbr.rel (%p148) target = $region28
        $region27: #{tpu_custom_call.1} parent=23 // pred_region
          %151 = dma.done %s144, 2048
        $region28: #{tpu_custom_call.1} parent=23 // pred_fallthru
          _
        %s152 = sand.u32 %s49, 1
        %s153 = scalar_lea.sflag [#allocation3], %s152
        %s154 = sand.u32 %s49, 1
        %s155 = smul.addr %s154, 128
        %s156 = scalar_lea.vmem [#allocation2], %s155
        %p157 = pneg %p62
        %p158 = pneg %p59
        %p159 = pneg %p92
        %p160 = pneg %p89
        %s161 = sand.u32 %s79, 1
        %s162 = scalar_lea.sflag [#allocation4], %s161
        %s163 = sand.u32 %s79, 1
        %s164 = smul.addr %s163, 128
        %s165 = scalar_lea.vmem [#allocation5], %s164
        %s166 = smul.u32 16, %s24
        %s167 = smul.u32 16, %s25
        %v168 = vld [vmem:[%s147] sm:$0xff]
        %v169 = vld [vmem:[%s147 + $0x8] sm:$0xff]
        %v170 = vld [vmem:[%s147 + $0x10] sm:$0xff]
        %v171 = vld [vmem:[%s147 + $0x18] sm:$0xff]
        %v172 = vld [vmem:[%s147 + $0x20] sm:$0xff]
        %v173 = vld [vmem:[%s147 + $0x28] sm:$0xff]
        %v174 = vld [vmem:[%s147 + $0x30] sm:$0xff]
        %v175 = vld [vmem:[%s147 + $0x38] sm:$0xff]
        %v176 = vld [vmem:[%s147 + $0x40] sm:$0xff]
        %v177 = vld [vmem:[%s147 + $0x48] sm:$0xff]
        %v178 = vld [vmem:[%s147 + $0x50] sm:$0xff]
        %v179 = vld [vmem:[%s147 + $0x58] sm:$0xff]
        %v180 = vld [vmem:[%s147 + $0x60] sm:$0xff]
        %v181 = vld [vmem:[%s147 + $0x68] sm:$0xff]
        %v182 = vld [vmem:[%s147 + $0x70] sm:$0xff]
        %v183 = vld [vmem:[%s147 + $0x78] sm:$0xff]
        %184 = vxpose.xlu0.b32.start [1/16] %v168, 128
        %185 = vxpose.xlu0.b32.cont [2/16] %v169, 128
        %186 = vxpose.xlu0.b32.cont [3/16] %v170, 128
        %187 = vxpose.xlu0.b32.cont [4/16] %v171, 128
        %188 = vxpose.xlu0.b32.cont [5/16] %v172, 128
        %189 = vxpose.xlu0.b32.cont [6/16] %v173, 128
        %190 = vxpose.xlu0.b32.cont [7/16] %v174, 128
        %191 = vxpose.xlu0.b32.cont [8/16] %v175, 128
        %192 = vxpose.xlu0.b32.cont [9/16] %v176, 128
        %193 = vxpose.xlu0.b32.cont [10/16] %v177, 128
        %194 = vxpose.xlu0.b32.cont [11/16] %v178, 128
        %195 = vxpose.xlu0.b32.cont [12/16] %v179, 128
        %196 = vxpose.xlu0.b32.cont [13/16] %v180, 128
        %197 = vxpose.xlu0.b32.cont [14/16] %v181, 128
        %198 = vxpose.xlu0.b32.cont [15/16] %v182, 128
        %199 = vxpose.xlu0.b32.end [16/16] %v183, 128
        %v200 = vpop.trf.xlu0
        %v201 = vpop.trf.xlu0
        %v202 = vpop.trf.xlu0
        %v203 = vpop.trf.xlu0
        %v204 = vpop.trf.xlu0
        %v205 = vpop.trf.xlu0
        %v206 = vpop.trf.xlu0
        %v207 = vpop.trf.xlu0
        %v208 = vpop.trf.xlu0
        %v209 = vpop.trf.xlu0
        %v210 = vpop.trf.xlu0
        %v211 = vpop.trf.xlu0
        %v212 = vpop.trf.xlu0
        %v213 = vpop.trf.xlu0
        %v214 = vpop.trf.xlu0
        %v215 = vpop.trf.xlu0
        %216 = vst [vmem:[%s165] sm:$0xff] %v200
        %217 = vst [vmem:[%s165 + $0x8] sm:$0xff] %v201
        %218 = vst [vmem:[%s165 + $0x10] sm:$0xff] %v202
        %219 = vst [vmem:[%s165 + $0x18] sm:$0xff] %v203
        %220 = vst [vmem:[%s165 + $0x20] sm:$0xff] %v204
        %221 = vst [vmem:[%s165 + $0x28] sm:$0xff] %v205
        %222 = vst [vmem:[%s165 + $0x30] sm:$0xff] %v206
        %223 = vst [vmem:[%s165 + $0x38] sm:$0xff] %v207
        %224 = vst [vmem:[%s165 + $0x40] sm:$0xff] %v208
        %225 = vst [vmem:[%s165 + $0x48] sm:$0xff] %v209
        %226 = vst [vmem:[%s165 + $0x50] sm:$0xff] %v210
        %227 = vst [vmem:[%s165 + $0x58] sm:$0xff] %v211
        %228 = vst [vmem:[%s165 + $0x60] sm:$0xff] %v212
        %229 = vst [vmem:[%s165 + $0x68] sm:$0xff] %v213
        %230 = vst [vmem:[%s165 + $0x70] sm:$0xff] %v214
        %231 = vst [vmem:[%s165 + $0x78] sm:$0xff] %v215
        %s232 = sand.u32 %s79, 1
        %s233 = scalar_lea.sflag [#allocation4], %s232
        %s234 = sand.u32 %s79, 1
        %s235 = smul.addr %s234, 128
        %s236 = scalar_lea.vmem [#allocation5], %s235
        // Predicated region
        $region29: #{tpu_custom_call.1} parent=23 // pred_check
          %p237 = pneg %p89
        $region30: #{tpu_custom_call.1} parent=23 // pred_check_branch
          %239 = sbr.rel (%p237) target = $region32
        $region31: #{tpu_custom_call.1} parent=23 // pred_region
          %s240 = smul.u32 16, %s25
          %s242 = ssub.s32 2048, 2048
          %243 = vsyncadd %s233, %s242
          %s244 = smul.addr %s240, 2
          %s245 = sadd.s32 %s24, %s244
          %s246 = smul.addr %s23, 96
          %s247 = sadd.s32 %s245, %s246
          %s248 = smul.addr %s247, 128
          %s249 = scalar_lea.hbm %s1, %s248
          %s250 = sshll.u32 %s236, 4
          %s251 = int_to_ptr.vmem [resolvable:$true] %s250
          %256 = dma.vmem_to_hbm [thread:$0]  %s251, 2048, %s249, %s233, 128, 256, 8
        $region32: #{tpu_custom_call.1} parent=23 // pred_fallthru
          _
      $region24: #{tpu_custom_call.1} parent=5 // pred_fallthru
        _
      %p257 = scmp.le.s32.totalorder 2, %s13
      // Predicated region
      $region33: #{tpu_custom_call.1} parent=5 // pred_check
        %p258 = pneg %p257
      $region34: #{tpu_custom_call.1} parent=5 // pred_check_branch
        %260 = sbr.rel (%p258) target = $region36
      $region35: #{tpu_custom_call.1} parent=5 // pred_region
        %s261 = ssub.s32 %s13, 2
        // Predicated region
        $region37: #{tpu_custom_call.1} parent=35 // pred_check
          %p262 = pneg %p95
        $region38: #{tpu_custom_call.1} parent=35 // pred_check_branch
          %264 = sbr.rel (%p262) target = $region40
        $region39: #{tpu_custom_call.1} parent=35 // pred_region
          %s265 = sand.u32 %s80, 1
          %s266 = scalar_lea.sflag [#allocation4], %s265
          %s267 = sand.u32 %s80, 1
          %s268 = smul.addr %s267, 128
          %s269 = scalar_lea.vmem [#allocation5], %s268
          %270 = dma.done %s266, 2048
        $region40: #{tpu_custom_call.1} parent=35 // pred_fallthru
          _
      $region36: #{tpu_custom_call.1} parent=5 // pred_fallthru
        _
    $region6: #{tpu_custom_call.1} parent=1 // loop_footer
      %s17 = sadd.s32 1, %s13
    $region7: #{tpu_custom_call.1} parent=1 // loop_footer_branch
      %12 = sbr.rel target = $region3
    $region8: #{tpu_custom_call.1} parent=1 // loop_exit
      _
    %271 = vsyncpa [#allocation3], 1
    %s272 = scalar_lea.sflag [#allocation3], 1
    %273 = vsyncpa %s272, 1
    %274 = vsyncpa [#allocation4], 1
    %s275 = scalar_lea.sflag [#allocation4], 1
    %276 = vsyncpa %s275, 1

</llo_original>
